<compile_context>
chip_gen: v6e
topology: v6e:2x2x1
jax: 0.10.0
libtpu: 0.0.40
codegen_flags: <defaults>
</compile_context>

<pallas_src>
import math

import jax
import jax.numpy as jnp
from jax.experimental import pallas as pl
from jax.experimental.pallas import tpu as pltpu


# ----------------------------------------------------------------------------
# Kernel
# ----------------------------------------------------------------------------
def msf_kernel(
    img_ref, tab_ref,            # [TB, E] activation tiles
    bn_ref,                      # [4, E]   rows: scale_img, shift_img, scale_tab, shift_tab
    bias_ref,                    # [8, 7E/4] packed biases (rows, zero padded)
    w0_ref,                      # [E, 7E/4]  = [wd1 | wd2 | wv1]
    ws1_ref,                     # [E, E]     = [wsi1 | wst1]
    wv2_ref,                     # [E/2, E/2]
    ws2_ref,                     # [E/2, E/2] = [wsi2 | wst2]
    wv3_ref,                     # [E/4, E/4]
    wu1_ref,                     # [E/4, E/2]
    wu2_ref,                     # [E/2, E]
    out_ref,                     # [TB, E]
):
    TB, E = img_ref.shape
    E2, E4 = E // 2, E // 4

    def mm(x, w_ref):
        return jnp.dot(x, w_ref[...], preferred_element_type=jnp.float32)

    def swap(x):
        # exchange the img/tab halves of the stacked batch axis
        return jnp.concatenate([x[TB:], x[:TB]], axis=0)

    # BatchNorm1d (eval) folded into per-feature scale/shift.
    img0 = img_ref[...] * bn_ref[0:1, :] + bn_ref[1:2, :]
    tab0 = tab_ref[...] * bn_ref[2:3, :] + bn_ref[3:4, :]
    x0 = jnp.concatenate([img0, tab0], axis=0)                 # [2TB, E]

    # Fused matmul #1: down1 / down2 / v_proj1 on both streams at once.
    y0 = mm(x0, w0_ref) + bias_ref[0:1, :E2 + E4 + E]
    x1 = jnp.maximum(y0[:, :E2], 0.0)                          # down1  [2TB, E/2]
    x2 = jnp.maximum(y0[:, E2:E2 + E4], 0.0)                   # down2  [2TB, E/4]
    v1 = y0[:, E2 + E4:]                                       # v_proj1 [2TB, E]

    # Cross_Attention with a length-1 key axis == v_proj(keyval) + query.
    o1 = swap(v1) + x0                                         # [out_img1; out_tab1]
    out1 = 0.5 * (o1[:TB] + o1[TB:])                           # mean over the cat'd seq axis

    # Fused [sample_img1 | sample_tab1]; img rows use the left half, tab rows the right.
    y1 = mm(o1, ws1_ref) + bias_ref[1:2, :2 * E2]
    x1 = x1 + jnp.concatenate([y1[:TB, :E2], y1[TB:, E2:]], axis=0)

    v2 = mm(x1, wv2_ref) + bias_ref[2:3, :E2]
    o2 = swap(v2) + x1                                         # [out_img2; out_tab2]
    out2 = 0.5 * (o2[:TB] + o2[TB:])

    y2 = mm(o2, ws2_ref) + bias_ref[3:4, :2 * E4]
    x2 = x2 + jnp.concatenate([y2[:TB, :E4], y2[TB:, E4:]], axis=0)

    v3 = mm(x2, wv3_ref) + bias_ref[4:5, :E4]
    o3 = swap(v3) + x2                                         # [out_img3; out_tab3]
    out3 = 0.5 * (o3[:TB] + o3[TB:])

    # TODO(synk): `Fusion` is not defined in the source file; implemented as
    # x + Linear(dim//2 -> dim)(y), the only shape-consistent residual fusion.
    f1 = out2 + mm(out3, wu1_ref) + bias_ref[5:6, :E2]
    f2 = out1 + mm(f1, wu2_ref) + bias_ref[6:7, :E]
    out_ref[...] = f2


# ----------------------------------------------------------------------------
# Host-side parameter packing (26 tensors -> 9 arrays, one per fused group)
# ----------------------------------------------------------------------------
def pack_params(p, E):
    maxw = 7 * E // 4

    def pad(b):
        return jnp.pad(b, ((0, 0), (0, maxw - b.shape[1])))

    w0 = jnp.concatenate([p["wd1"], p["wd2"], p["wv1"]], axis=1)       # [E, 7E/4]
    ws1 = jnp.concatenate([p["wsi1"], p["wst1"]], axis=1)              # [E, E]
    ws2 = jnp.concatenate([p["wsi2"], p["wst2"]], axis=1)              # [E/2, E/2]

    bias = jnp.concatenate(
        [
            pad(jnp.concatenate([p["bd1"], p["bd2"], p["bv1"]], axis=1)),
            pad(jnp.concatenate([p["bsi1"], p["bst1"]], axis=1)),
            pad(p["bv2"]),
            pad(jnp.concatenate([p["bsi2"], p["bst2"]], axis=1)),
            pad(p["bv3"]),
            pad(p["bu1"]),
            pad(p["bu2"]),
            jnp.zeros((1, maxw), jnp.float32),
        ],
        axis=0,
    )                                                                  # [8, 7E/4]

    bn = jnp.concatenate(
        [p["bn_i_scale"], p["bn_i_shift"], p["bn_t_scale"], p["bn_t_shift"]],
        axis=0,
    )                                                                  # [4, E]

    return (bn, bias, w0, ws1, p["wv2"], ws2, p["wv3"], p["wu1"], p["wu2"])


def multiscale_fusion(img, tab, params, *, batch_tile=256):
    B, E = img.shape
    packed = pack_params(params, E)

    # Batch tile: largest candidate (multiple of 8) that divides B; else whole B.
    TB = B
    for cand in (batch_tile, 128, 64, 32, 16, 8):
        if cand <= B and B % cand == 0:
            TB = cand
            break
    grid = (B // TB,)

    act_spec = lambda: pl.BlockSpec((TB, E), lambda i: (i, 0))
    # Parameters: full-array block, constant index_map -> resident across steps.
    par_spec = lambda a: pl.BlockSpec(a.shape, lambda i: (0, 0))

    return pl.pallas_call(
        msf_kernel,
        out_shape=jax.ShapeDtypeStruct((B, E), jnp.float32),
        grid=grid,
        in_specs=[act_spec(), act_spec()] + [par_spec(a) for a in packed],
        out_specs=act_spec(),
        compiler_params=pltpu.CompilerParams(
            dimension_semantics=("parallel",)),
    )(img, tab, *packed)


# ----------------------------------------------------------------------------
# Parameter init (PyTorch-style) and pure-JAX reference of the full module
# ----------------------------------------------------------------------------
def init_params(key, E):
    ks = iter(jax.random.split(key, 64))

    def linear(fan_in, fan_out):
        k1, k2 = jax.random.split(next(ks))
        bound = 1.0 / math.sqrt(fan_in)
        w = jax.random.uniform(k1, (fan_in, fan_out), jnp.float32, -bound, bound)
        b = jax.random.uniform(k2, (1, fan_out), jnp.float32, -bound, bound)
        return w, b

    p = {}
    eps = 1e-5
    # BatchNorm1d at init (eval mode): gamma=1, beta=0, running mean=0, var=1.
    scale = jnp.full((1, E), 1.0 / math.sqrt(1.0 + eps), jnp.float32)
    shift = jnp.zeros((1, E), jnp.float32)
    p["bn_i_scale"], p["bn_i_shift"] = scale, shift
    p["bn_t_scale"], p["bn_t_shift"] = scale, shift
    p["wd1"], p["bd1"] = linear(E, E // 2)
    p["wd2"], p["bd2"] = linear(E, E // 4)
    # Cross_Attention q/k/v (q/k only used by the reference; they provably do
    # not affect the output because the key axis has length 1).
    for i, d in ((1, E), (2, E // 2), (3, E // 4)):
        p[f"wq{i}"], p[f"bq{i}"] = linear(d, d)
        p[f"wk{i}"], p[f"bk{i}"] = linear(d, d)
        p[f"wv{i}"], p[f"bv{i}"] = linear(d, d)
    p["wsi1"], p["bsi1"] = linear(E, E // 2)
    p["wst1"], p["bst1"] = linear(E, E // 2)
    p["wsi2"], p["bsi2"] = linear(E // 2, E // 4)
    p["wst2"], p["bst2"] = linear(E // 2, E // 4)
    p["wu1"], p["bu1"] = linear(E // 4, E // 2)   # Fusion(E//2)
    p["wu2"], p["bu2"] = linear(E // 2, E)        # Fusion(E)
    return p


def reference(img, tab, p):
    """Pure-JAX mirror of the PyTorch forward (incl. full multi-head softmax)."""
    def lin(x, w, b):
        return x @ w + b

    def relu(x):
        return jnp.maximum(x, 0.0)

    def cross_attention(query, keyval, wq, bq, wk, bk, wv, bv, num_heads):
        q = lin(query, wq, bq)
        k = lin(keyval, wk, bk)
        v = lin(keyval, wv, bv)
        B, L, D = q.shape
        d = D // num_heads
        q = q.reshape(B, L, num_heads, d).transpose(0, 2, 1, 3)
        k = k.reshape(B, L, num_heads, d).transpose(0, 2, 1, 3)
        v = v.reshape(B, L, num_heads, d).transpose(0, 2, 1, 3)
        attn = (q @ jnp.swapaxes(k, -2, -1)) * (d ** -0.5)
        attn = jax.nn.softmax(attn, axis=-1)
        out = attn @ v
        out = out.transpose(0, 2, 1, 3).reshape(B, L, D)
        return out + query

    img0 = (img * p["bn_i_scale"] + p["bn_i_shift"])[:, None, :]
    tab0 = (tab * p["bn_t_scale"] + p["bn_t_shift"])[:, None, :]
    img1 = relu(lin(img0, p["wd1"], p["bd1"]))
    tab1 = relu(lin(tab0, p["wd1"], p["bd1"]))
    img2 = relu(lin(img0, p["wd2"], p["bd2"]))
    tab2 = relu(lin(tab0, p["wd2"], p["bd2"]))

    ca1 = lambda q_, kv_: cross_attention(q_, kv_, p["wq1"], p["bq1"], p["wk1"],
                                          p["bk1"], p["wv1"], p["bv1"], 4)
    ca2 = lambda q_, kv_: cross_attention(q_, kv_, p["wq2"], p["bq2"], p["wk2"],
                                          p["bk2"], p["wv2"], p["bv2"], 2)
    ca3 = lambda q_, kv_: cross_attention(q_, kv_, p["wq3"], p["bq3"], p["wk3"],
                                          p["bk3"], p["wv3"], p["bv3"], 2)

    out_img1 = ca1(img0, tab0)
    out_tab1 = ca1(tab0, img0)
    out1 = jnp.concatenate([out_img1, out_tab1], axis=1).mean(axis=1)
    img1 = img1 + lin(out_img1, p["wsi1"], p["bsi1"])
    tab1 = tab1 + lin(out_tab1, p["wst1"], p["bst1"])

    out_img2 = ca2(img1, tab1)
    out_tab2 = ca2(tab1, img1)
    out2 = jnp.concatenate([out_img2, out_tab2], axis=1).mean(axis=1)
    img2 = img2 + lin(out_img2, p["wsi2"], p["bsi2"])
    tab2 = tab2 + lin(out_tab2, p["wst2"], p["bst2"])

    out_img3 = ca3(img2, tab2)
    out_tab3 = ca3(tab2, img2)
    out3 = jnp.concatenate([out_img3, out_tab3], axis=1).mean(axis=1)

    f1 = out2 + (out3 @ p["wu1"] + p["bu1"])
    f2 = out1 + (f1 @ p["wu2"] + p["bu2"])
    return f2


if __name__ == "__main__":
    B, E = 8, 32
    key = jax.random.PRNGKey(0)
    k_img, k_tab, k_par = jax.random.split(key, 3)
    img = jax.random.normal(k_img, (B, E), jnp.float32)
    tab = jax.random.normal(k_tab, (B, E), jnp.float32)
    params = init_params(k_par, E)

    out = multiscale_fusion(img, tab, params)
    out = jax.block_until_ready(out)

    ref = reference(img, tab, params)
    assert out.shape == (B, E)
    err = float(jnp.max(jnp.abs(out - ref)))
    assert jnp.allclose(out, ref, atol=1e-5, rtol=1e-5), err
    print("KERNEL_OK")
</pallas_src>

<mosaic_0001>
module attributes {stable_mosaic.version = 11 : i64} {
  func.func @msf_kernel(%arg0: i32, %arg1: memref<8x32xf32, #tpu.memory_space<vmem>>, %arg2: memref<8x32xf32, #tpu.memory_space<vmem>>, %arg3: memref<4x32xf32, #tpu.memory_space<vmem>>, %arg4: memref<8x56xf32, #tpu.memory_space<vmem>>, %arg5: memref<32x56xf32, #tpu.memory_space<vmem>>, %arg6: memref<32x32xf32, #tpu.memory_space<vmem>>, %arg7: memref<16x16xf32, #tpu.memory_space<vmem>>, %arg8: memref<16x16xf32, #tpu.memory_space<vmem>>, %arg9: memref<8x8xf32, #tpu.memory_space<vmem>>, %arg10: memref<8x16xf32, #tpu.memory_space<vmem>>, %arg11: memref<16x32xf32, #tpu.memory_space<vmem>>, %arg12: memref<8x32xf32, #tpu.memory_space<vmem>>) attributes {dimension_semantics = [#tpu.dimension_semantics<parallel>], iteration_bounds = array<i64: 1>, scalar_prefetch = 0 : i64, scratch_operands = 0 : i64, tpu.core_type = #tpu.core_type<tc>, window_params = [{transform_indices = @transform_0, window_bounds = array<i64: 8, 32>}, {transform_indices = @transform_1, window_bounds = array<i64: 8, 32>}, {pipeline_mode = #tpu.pipeline_mode<synchronous>, transform_indices = @transform_2, window_bounds = array<i64: 4, 32>}, {pipeline_mode = #tpu.pipeline_mode<synchronous>, transform_indices = @transform_3, window_bounds = array<i64: 8, 56>}, {pipeline_mode = #tpu.pipeline_mode<synchronous>, transform_indices = @transform_4, window_bounds = array<i64: 32, 56>}, {pipeline_mode = #tpu.pipeline_mode<synchronous>, transform_indices = @transform_5, window_bounds = array<i64: 32, 32>}, {pipeline_mode = #tpu.pipeline_mode<synchronous>, transform_indices = @transform_6, window_bounds = array<i64: 16, 16>}, {pipeline_mode = #tpu.pipeline_mode<synchronous>, transform_indices = @transform_7, window_bounds = array<i64: 16, 16>}, {pipeline_mode = #tpu.pipeline_mode<synchronous>, transform_indices = @transform_8, window_bounds = array<i64: 8, 8>}, {pipeline_mode = #tpu.pipeline_mode<synchronous>, transform_indices = @transform_9, window_bounds = array<i64: 8, 16>}, {pipeline_mode = #tpu.pipeline_mode<synchronous>, transform_indices = @transform_10, window_bounds = array<i64: 16, 32>}, {transform_indices = @transform_11, window_bounds = array<i64: 8, 32>}]} {
    %c0 = arith.constant 0 : index
    %c0_0 = arith.constant 0 : index
    %0 = vector.load %arg1[%c0, %c0_0] : memref<8x32xf32, #tpu.memory_space<vmem>>, vector<8x32xf32>
    %c0_1 = arith.constant 0 : index
    %c0_2 = arith.constant 0 : index
    %1 = vector.load %arg3[%c0_1, %c0_2] : memref<4x32xf32, #tpu.memory_space<vmem>>, vector<1x32xf32>
    %2 = vector.broadcast %1 : vector<1x32xf32> to vector<8x32xf32>
    %3 = arith.mulf %0, %2 : vector<8x32xf32>
    %c1 = arith.constant 1 : index
    %c0_3 = arith.constant 0 : index
    %4 = vector.load %arg3[%c1, %c0_3] : memref<4x32xf32, #tpu.memory_space<vmem>>, vector<1x32xf32>
    %5 = vector.broadcast %4 : vector<1x32xf32> to vector<8x32xf32>
    %6 = arith.addf %3, %5 : vector<8x32xf32>
    %c0_4 = arith.constant 0 : index
    %c0_5 = arith.constant 0 : index
    %7 = vector.load %arg2[%c0_4, %c0_5] : memref<8x32xf32, #tpu.memory_space<vmem>>, vector<8x32xf32>
    %c2 = arith.constant 2 : index
    %c0_6 = arith.constant 0 : index
    %8 = vector.load %arg3[%c2, %c0_6] : memref<4x32xf32, #tpu.memory_space<vmem>>, vector<1x32xf32>
    %9 = vector.broadcast %8 : vector<1x32xf32> to vector<8x32xf32>
    %10 = arith.mulf %7, %9 : vector<8x32xf32>
    %c3 = arith.constant 3 : index
    %c0_7 = arith.constant 0 : index
    %11 = vector.load %arg3[%c3, %c0_7] : memref<4x32xf32, #tpu.memory_space<vmem>>, vector<1x32xf32>
    %12 = vector.broadcast %11 : vector<1x32xf32> to vector<8x32xf32>
    %13 = arith.addf %10, %12 : vector<8x32xf32>
    %14 = tpu.concatenate %6, %13 in 0 : vector<8x32xf32>, vector<8x32xf32> -> vector<16x32xf32>
    %c0_8 = arith.constant 0 : index
    %c0_9 = arith.constant 0 : index
    %15 = vector.load %arg5[%c0_8, %c0_9] : memref<32x56xf32, #tpu.memory_space<vmem>>, vector<32x56xf32>
    %cst = arith.constant dense<0.000000e+00> : vector<16x56xf32>
    %16 = tpu.matmul %14, %15, %cst {dimension_numbers = #tpu.dot_dimension_numbers<[1], [0], [0], [1], [0, 0, 1, 1], [], []>} : vector<16x32xf32>, vector<32x56xf32>, vector<16x56xf32> -> vector<16x56xf32>
    %c0_10 = arith.constant 0 : index
    %c0_11 = arith.constant 0 : index
    %17 = vector.load %arg4[%c0_10, %c0_11] : memref<8x56xf32, #tpu.memory_space<vmem>>, vector<1x56xf32>
    %18 = vector.broadcast %17 : vector<1x56xf32> to vector<16x56xf32>
    %19 = arith.addf %16, %18 : vector<16x56xf32>
    %20 = vector.extract_strided_slice %19 {offsets = [0, 0], sizes = [16, 16], strides = [1, 1]} : vector<16x56xf32> to vector<16x16xf32>
    %cst_12 = arith.constant 0.000000e+00 : f32
    %21 = vector.broadcast %cst_12 : f32 to vector<16x16xf32>
    %22 = arith.maximumf %20, %21 : vector<16x16xf32>
    %23 = vector.extract_strided_slice %19 {offsets = [0, 16], sizes = [16, 8], strides = [1, 1]} : vector<16x56xf32> to vector<16x8xf32>
    %cst_13 = arith.constant 0.000000e+00 : f32
    %24 = vector.broadcast %cst_13 : f32 to vector<16x8xf32>
    %25 = arith.maximumf %23, %24 : vector<16x8xf32>
    %26 = vector.extract_strided_slice %19 {offsets = [0, 24], sizes = [16, 32], strides = [1, 1]} : vector<16x56xf32> to vector<16x32xf32>
    %27 = vector.extract_strided_slice %26 {offsets = [8, 0], sizes = [8, 32], strides = [1, 1]} : vector<16x32xf32> to vector<8x32xf32>
    %28 = vector.extract_strided_slice %26 {offsets = [0, 0], sizes = [8, 32], strides = [1, 1]} : vector<16x32xf32> to vector<8x32xf32>
    %29 = tpu.concatenate %27, %28 in 0 : vector<8x32xf32>, vector<8x32xf32> -> vector<16x32xf32>
    %30 = arith.addf %29, %14 : vector<16x32xf32>
    %31 = vector.extract_strided_slice %30 {offsets = [0, 0], sizes = [8, 32], strides = [1, 1]} : vector<16x32xf32> to vector<8x32xf32>
    %32 = vector.extract_strided_slice %30 {offsets = [8, 0], sizes = [8, 32], strides = [1, 1]} : vector<16x32xf32> to vector<8x32xf32>
    %33 = arith.addf %31, %32 : vector<8x32xf32>
    %cst_14 = arith.constant 5.000000e-01 : f32
    %34 = vector.broadcast %cst_14 : f32 to vector<8x32xf32>
    %35 = arith.mulf %34, %33 : vector<8x32xf32>
    %c0_15 = arith.constant 0 : index
    %c0_16 = arith.constant 0 : index
    %36 = vector.load %arg6[%c0_15, %c0_16] : memref<32x32xf32, #tpu.memory_space<vmem>>, vector<32x32xf32>
    %cst_17 = arith.constant dense<0.000000e+00> : vector<16x32xf32>
    %37 = tpu.matmul %30, %36, %cst_17 {dimension_numbers = #tpu.dot_dimension_numbers<[1], [0], [0], [1], [0, 0, 1, 1], [], []>} : vector<16x32xf32>, vector<32x32xf32>, vector<16x32xf32> -> vector<16x32xf32>
    %c1_18 = arith.constant 1 : index
    %c0_19 = arith.constant 0 : index
    %38 = vector.load %arg4[%c1_18, %c0_19] : memref<8x56xf32, #tpu.memory_space<vmem>>, vector<1x32xf32>
    %39 = vector.broadcast %38 : vector<1x32xf32> to vector<16x32xf32>
    %40 = arith.addf %37, %39 : vector<16x32xf32>
    %41 = vector.extract_strided_slice %40 {offsets = [0, 0], sizes = [8, 16], strides = [1, 1]} : vector<16x32xf32> to vector<8x16xf32>
    %42 = vector.extract_strided_slice %40 {offsets = [8, 16], sizes = [8, 16], strides = [1, 1]} : vector<16x32xf32> to vector<8x16xf32>
    %43 = tpu.concatenate %41, %42 in 0 : vector<8x16xf32>, vector<8x16xf32> -> vector<16x16xf32>
    %44 = arith.addf %22, %43 : vector<16x16xf32>
    %c0_20 = arith.constant 0 : index
    %c0_21 = arith.constant 0 : index
    %45 = vector.load %arg7[%c0_20, %c0_21] : memref<16x16xf32, #tpu.memory_space<vmem>>, vector<16x16xf32>
    %cst_22 = arith.constant dense<0.000000e+00> : vector<16x16xf32>
    %46 = tpu.matmul %44, %45, %cst_22 {dimension_numbers = #tpu.dot_dimension_numbers<[1], [0], [0], [1], [0, 0, 1, 1], [], []>} : vector<16x16xf32>, vector<16x16xf32>, vector<16x16xf32> -> vector<16x16xf32>
    %c2_23 = arith.constant 2 : index
    %c0_24 = arith.constant 0 : index
    %47 = vector.load %arg4[%c2_23, %c0_24] : memref<8x56xf32, #tpu.memory_space<vmem>>, vector<1x16xf32>
    %48 = vector.broadcast %47 : vector<1x16xf32> to vector<16x16xf32>
    %49 = arith.addf %46, %48 : vector<16x16xf32>
    %50 = vector.extract_strided_slice %49 {offsets = [8, 0], sizes = [8, 16], strides = [1, 1]} : vector<16x16xf32> to vector<8x16xf32>
    %51 = vector.extract_strided_slice %49 {offsets = [0, 0], sizes = [8, 16], strides = [1, 1]} : vector<16x16xf32> to vector<8x16xf32>
    %52 = tpu.concatenate %50, %51 in 0 : vector<8x16xf32>, vector<8x16xf32> -> vector<16x16xf32>
    %53 = arith.addf %52, %44 : vector<16x16xf32>
    %54 = vector.extract_strided_slice %53 {offsets = [0, 0], sizes = [8, 16], strides = [1, 1]} : vector<16x16xf32> to vector<8x16xf32>
    %55 = vector.extract_strided_slice %53 {offsets = [8, 0], sizes = [8, 16], strides = [1, 1]} : vector<16x16xf32> to vector<8x16xf32>
    %56 = arith.addf %54, %55 : vector<8x16xf32>
    %cst_25 = arith.constant 5.000000e-01 : f32
    %57 = vector.broadcast %cst_25 : f32 to vector<8x16xf32>
    %58 = arith.mulf %57, %56 : vector<8x16xf32>
    %c0_26 = arith.constant 0 : index
    %c0_27 = arith.constant 0 : index
    %59 = vector.load %arg8[%c0_26, %c0_27] : memref<16x16xf32, #tpu.memory_space<vmem>>, vector<16x16xf32>
    %cst_28 = arith.constant dense<0.000000e+00> : vector<16x16xf32>
    %60 = tpu.matmul %53, %59, %cst_28 {dimension_numbers = #tpu.dot_dimension_numbers<[1], [0], [0], [1], [0, 0, 1, 1], [], []>} : vector<16x16xf32>, vector<16x16xf32>, vector<16x16xf32> -> vector<16x16xf32>
    %c3_29 = arith.constant 3 : index
    %c0_30 = arith.constant 0 : index
    %61 = vector.load %arg4[%c3_29, %c0_30] : memref<8x56xf32, #tpu.memory_space<vmem>>, vector<1x16xf32>
    %62 = vector.broadcast %61 : vector<1x16xf32> to vector<16x16xf32>
    %63 = arith.addf %60, %62 : vector<16x16xf32>
    %64 = vector.extract_strided_slice %63 {offsets = [0, 0], sizes = [8, 8], strides = [1, 1]} : vector<16x16xf32> to vector<8x8xf32>
    %65 = vector.extract_strided_slice %63 {offsets = [8, 8], sizes = [8, 8], strides = [1, 1]} : vector<16x16xf32> to vector<8x8xf32>
    %66 = tpu.concatenate %64, %65 in 0 : vector<8x8xf32>, vector<8x8xf32> -> vector<16x8xf32>
    %67 = arith.addf %25, %66 : vector<16x8xf32>
    %c0_31 = arith.constant 0 : index
    %c0_32 = arith.constant 0 : index
    %68 = vector.load %arg9[%c0_31, %c0_32] : memref<8x8xf32, #tpu.memory_space<vmem>>, vector<8x8xf32>
    %cst_33 = arith.constant dense<0.000000e+00> : vector<16x8xf32>
    %69 = tpu.matmul %67, %68, %cst_33 {dimension_numbers = #tpu.dot_dimension_numbers<[1], [0], [0], [1], [0, 0, 1, 1], [], []>} : vector<16x8xf32>, vector<8x8xf32>, vector<16x8xf32> -> vector<16x8xf32>
    %c4 = arith.constant 4 : index
    %c0_34 = arith.constant 0 : index
    %70 = vector.load %arg4[%c4, %c0_34] : memref<8x56xf32, #tpu.memory_space<vmem>>, vector<1x8xf32>
    %71 = vector.broadcast %70 : vector<1x8xf32> to vector<16x8xf32>
    %72 = arith.addf %69, %71 : vector<16x8xf32>
    %73 = vector.extract_strided_slice %72 {offsets = [8, 0], sizes = [8, 8], strides = [1, 1]} : vector<16x8xf32> to vector<8x8xf32>
    %74 = vector.extract_strided_slice %72 {offsets = [0, 0], sizes = [8, 8], strides = [1, 1]} : vector<16x8xf32> to vector<8x8xf32>
    %75 = tpu.concatenate %73, %74 in 0 : vector<8x8xf32>, vector<8x8xf32> -> vector<16x8xf32>
    %76 = arith.addf %75, %67 : vector<16x8xf32>
    %77 = vector.extract_strided_slice %76 {offsets = [0, 0], sizes = [8, 8], strides = [1, 1]} : vector<16x8xf32> to vector<8x8xf32>
    %78 = vector.extract_strided_slice %76 {offsets = [8, 0], sizes = [8, 8], strides = [1, 1]} : vector<16x8xf32> to vector<8x8xf32>
    %79 = arith.addf %77, %78 : vector<8x8xf32>
    %cst_35 = arith.constant 5.000000e-01 : f32
    %80 = vector.broadcast %cst_35 : f32 to vector<8x8xf32>
    %81 = arith.mulf %80, %79 : vector<8x8xf32>
    %c0_36 = arith.constant 0 : index
    %c0_37 = arith.constant 0 : index
    %82 = vector.load %arg10[%c0_36, %c0_37] : memref<8x16xf32, #tpu.memory_space<vmem>>, vector<8x16xf32>
    %cst_38 = arith.constant dense<0.000000e+00> : vector<8x16xf32>
    %83 = tpu.matmul %81, %82, %cst_38 {dimension_numbers = #tpu.dot_dimension_numbers<[1], [0], [0], [1], [0, 0, 1, 1], [], []>} : vector<8x8xf32>, vector<8x16xf32>, vector<8x16xf32> -> vector<8x16xf32>
    %84 = arith.addf %58, %83 : vector<8x16xf32>
    %c5 = arith.constant 5 : index
    %c0_39 = arith.constant 0 : index
    %85 = vector.load %arg4[%c5, %c0_39] : memref<8x56xf32, #tpu.memory_space<vmem>>, vector<1x16xf32>
    %86 = vector.broadcast %85 : vector<1x16xf32> to vector<8x16xf32>
    %87 = arith.addf %84, %86 : vector<8x16xf32>
    %c0_40 = arith.constant 0 : index
    %c0_41 = arith.constant 0 : index
    %88 = vector.load %arg11[%c0_40, %c0_41] : memref<16x32xf32, #tpu.memory_space<vmem>>, vector<16x32xf32>
    %cst_42 = arith.constant dense<0.000000e+00> : vector<8x32xf32>
    %89 = tpu.matmul %87, %88, %cst_42 {dimension_numbers = #tpu.dot_dimension_numbers<[1], [0], [0], [1], [0, 0, 1, 1], [], []>} : vector<8x16xf32>, vector<16x32xf32>, vector<8x32xf32> -> vector<8x32xf32>
    %90 = arith.addf %35, %89 : vector<8x32xf32>
    %c6 = arith.constant 6 : index
    %c0_43 = arith.constant 0 : index
    %91 = vector.load %arg4[%c6, %c0_43] : memref<8x56xf32, #tpu.memory_space<vmem>>, vector<1x32xf32>
    %92 = vector.broadcast %91 : vector<1x32xf32> to vector<8x32xf32>
    %93 = arith.addf %90, %92 : vector<8x32xf32>
    %c0_44 = arith.constant 0 : index
    %c0_45 = arith.constant 0 : index
    %94 = vector.load %arg12[%c0_44, %c0_45] : memref<8x32xf32, #tpu.memory_space<vmem>>, vector<8x32xf32>
    tpu.vector_store %arg12[%c0_44, %c0_45], %93 {strides = array<i32>} : memref<8x32xf32, #tpu.memory_space<vmem>>, vector<8x32xf32>,
    return
  }
  func.func @transform_0(%arg0: i32) -> (i32, i32) {
    %c0_i32 = arith.constant 0 : i32
    %c0_i32_0 = arith.constant 0 : i32
    return %arg0, %c0_i32 : i32, i32
  }
  func.func @transform_1(%arg0: i32) -> (i32, i32) {
    %c0_i32 = arith.constant 0 : i32
    %c0_i32_0 = arith.constant 0 : i32
    return %arg0, %c0_i32 : i32, i32
  }
  func.func @transform_2(%arg0: i32) -> (i32, i32) {
    %c0_i32 = arith.constant 0 : i32
    %c0_i32_0 = arith.constant 0 : i32
    %c0_i32_1 = arith.constant 0 : i32
    return %c0_i32, %c0_i32_0 : i32, i32
  }
  func.func @transform_3(%arg0: i32) -> (i32, i32) {
    %c0_i32 = arith.constant 0 : i32
    %c0_i32_0 = arith.constant 0 : i32
    %c0_i32_1 = arith.constant 0 : i32
    return %c0_i32, %c0_i32_0 : i32, i32
  }
  func.func @transform_4(%arg0: i32) -> (i32, i32) {
    %c0_i32 = arith.constant 0 : i32
    %c0_i32_0 = arith.constant 0 : i32
    %c0_i32_1 = arith.constant 0 : i32
    return %c0_i32, %c0_i32_0 : i32, i32
  }
  func.func @transform_5(%arg0: i32) -> (i32, i32) {
    %c0_i32 = arith.constant 0 : i32
    %c0_i32_0 = arith.constant 0 : i32
    %c0_i32_1 = arith.constant 0 : i32
    return %c0_i32, %c0_i32_0 : i32, i32
  }
  func.func @transform_6(%arg0: i32) -> (i32, i32) {
    %c0_i32 = arith.constant 0 : i32
    %c0_i32_0 = arith.constant 0 : i32
    %c0_i32_1 = arith.constant 0 : i32
    return %c0_i32, %c0_i32_0 : i32, i32
  }
  func.func @transform_7(%arg0: i32) -> (i32, i32) {
    %c0_i32 = arith.constant 0 : i32
    %c0_i32_0 = arith.constant 0 : i32
    %c0_i32_1 = arith.constant 0 : i32
    return %c0_i32, %c0_i32_0 : i32, i32
  }
  func.func @transform_8(%arg0: i32) -> (i32, i32) {
    %c0_i32 = arith.constant 0 : i32
    %c0_i32_0 = arith.constant 0 : i32
    %c0_i32_1 = arith.constant 0 : i32
    return %c0_i32, %c0_i32_0 : i32, i32
  }
  func.func @transform_9(%arg0: i32) -> (i32, i32) {
    %c0_i32 = arith.constant 0 : i32
    %c0_i32_0 = arith.constant 0 : i32
    %c0_i32_1 = arith.constant 0 : i32
    return %c0_i32, %c0_i32_0 : i32, i32
  }
  func.func @transform_10(%arg0: i32) -> (i32, i32) {
    %c0_i32 = arith.constant 0 : i32
    %c0_i32_0 = arith.constant 0 : i32
    %c0_i32_1 = arith.constant 0 : i32
    return %c0_i32, %c0_i32_0 : i32, i32
  }
  func.func @transform_11(%arg0: i32) -> (i32, i32) {
    %c0_i32 = arith.constant 0 : i32
    %c0_i32_0 = arith.constant 0 : i32
    return %arg0, %c0_i32 : i32, i32
  }
}

</mosaic_0001>

<llo_original>
// kernel: tpu_custom_call.1
$region0: #{tpu_custom_call.1}
  #allocation0 [shape = 'u32[]', space=smem, size = 0x4, offset = 0x4, fixed_abs, tag = 'smem constant byte address 0x4 - core index']
  #allocation1 [shape = 'u32[144,128]{1,0:T(1,128)}', space=vmem, size = 0x12000, scoped, tag = 'internal scratch']
  %s0 = inlined_call_operand.hbm [shape: f32[8,32], index: 0, kind: input, shape index: {}]
  %s1 = inlined_call_operand.hbm [shape: f32[8,32], index: 1, kind: input, shape index: {}]
  %s2 = inlined_call_operand.hbm [shape: f32[4,32], index: 2, kind: input, shape index: {}]
  %s3 = inlined_call_operand.hbm [shape: f32[8,56], index: 3, kind: input, shape index: {}]
  %s4 = inlined_call_operand.hbm [shape: f32[32,56], index: 4, kind: input, shape index: {}]
  %s5 = inlined_call_operand.hbm [shape: f32[32,32], index: 5, kind: input, shape index: {}]
  %s6 = inlined_call_operand.hbm [shape: f32[16,16], index: 6, kind: input, shape index: {}]
  %s7 = inlined_call_operand.hbm [shape: f32[16,16], index: 7, kind: input, shape index: {}]
  %s8 = inlined_call_operand.hbm [shape: f32[8,8], index: 8, kind: input, shape index: {}]
  %s9 = inlined_call_operand.hbm [shape: f32[8,16], index: 9, kind: input, shape index: {}]
  %s10 = inlined_call_operand.vmem [shape: f32[16,32], index: 10, kind: input, shape index: {}]
  %s11 = inlined_call_operand.hbm [shape: f32[8,32], index: 11, kind: output, shape index: {}]
  %s12 = sld [smem:[#allocation0]]
  $region94: #{tpu_custom_call.1} parent=0
    _
  %s14 = ssub.s32 1, %s12
  %s15 = scalar_select 0, %s14, %s12
  $region1: #{tpu_custom_call.1} parent=0
    #allocation2 [shape = 'u8[4096]{0}', space=vmem, size = 0x1000, scoped, tag = 'input window, operand 0, single buffered']
    #allocation3 [shape = 's32[1]{0}', space=sflag, size = 0x4, scoped, tag = 'scoped memory for tpu_custom_call.1']
    #allocation4 [shape = 's32[1]{0}', space=sflag, size = 0x4, scoped, tag = 'scoped memory for tpu_custom_call.1']
    #allocation5 [shape = 'u8[4096]{0}', space=vmem, size = 0x1000, scoped, tag = 'input window, operand 1, single buffered']
    #allocation6 [shape = 's32[1]{0}', space=sflag, size = 0x4, scoped, tag = 'scoped memory for tpu_custom_call.1']
    #allocation7 [shape = 'u8[2048]{0}', space=vmem, size = 0x800, scoped, tag = 'input window, operand 2, single buffered']
    #allocation8 [shape = 'u8[4096]{0}', space=vmem, size = 0x1000, scoped, tag = 'input window, operand 3, single buffered']
    #allocation9 [shape = 's32[1]{0}', space=sflag, size = 0x4, scoped, tag = 'scoped memory for tpu_custom_call.1']
    #allocation10 [shape = 'u8[16384]{0}', space=vmem, size = 0x4000, scoped, tag = 'input window, operand 4, single buffered']
    #allocation11 [shape = 'u8[16384]{0}', space=vmem, size = 0x4000, scoped, tag = 'input window, operand 5, single buffered']
    #allocation12 [shape = 's32[1]{0}', space=sflag, size = 0x4, scoped, tag = 'scoped memory for tpu_custom_call.1']
    #allocation13 [shape = 'u8[8192]{0}', space=vmem, size = 0x2000, scoped, tag = 'input window, operand 6, single buffered']
    #allocation14 [shape = 'u8[8192]{0}', space=vmem, size = 0x2000, scoped, tag = 'input window, operand 7, single buffered']
    #allocation15 [shape = 's32[1]{0}', space=sflag, size = 0x4, scoped, tag = 'scoped memory for tpu_custom_call.1']
    #allocation16 [shape = 'u8[4096]{0}', space=vmem, size = 0x1000, scoped, tag = 'input window, operand 8, single buffered']
    #allocation17 [shape = 'u8[4096]{0}', space=vmem, size = 0x1000, scoped, tag = 'input window, operand 9, single buffered']
    #allocation18 [shape = 's32[1]{0}', space=sflag, size = 0x4, scoped, tag = 'scoped memory for tpu_custom_call.1']
    #allocation19 [shape = 'u8[4096]{0}', space=vmem, size = 0x1000, scoped, tag = 'output window, operand 0, single buffered']
    %16 = vsyncpa [#allocation3], 0
    %17 = vsyncpa [#allocation6], 0
    %18 = vsyncpa [#allocation9], 0
    %19 = vsyncpa [#allocation12], 0
    %20 = vsyncpa [#allocation15], 0
    %21 = vsyncpa [#allocation18], 0
    %22 = vsyncpa [#allocation4], 0
    // Predicated region
    $region2: #{tpu_custom_call.1} parent=1 // pred_check
      _
    $region3: #{tpu_custom_call.1} parent=1 // pred_check_branch
      %24 = sbr.rel (0) target = $region5
    $region4: #{tpu_custom_call.1} parent=1 // pred_region
      %s26 = ssub.s32 128, 128
      %27 = vsyncadd [#allocation3], %s26
      %s29 = sshll.u32 [#allocation2], 4
      %s30 = int_to_ptr.vmem [resolvable:$true] %s29
      %32 = dma.hbm_to_vmem [thread:$0]  %s0, 128, %s30, [#allocation3]
    $region5: #{tpu_custom_call.1} parent=1 // pred_fallthru
      _
    // Predicated region
    $region6: #{tpu_custom_call.1} parent=1 // pred_check
      _
    $region7: #{tpu_custom_call.1} parent=1 // pred_check_branch
      %34 = sbr.rel (0) target = $region9
    $region8: #{tpu_custom_call.1} parent=1 // pred_region
      %s36 = ssub.s32 128, 128
      %37 = vsyncadd [#allocation6], %s36
      %s39 = sshll.u32 [#allocation5], 4
      %s40 = int_to_ptr.vmem [resolvable:$true] %s39
      %42 = dma.hbm_to_vmem [thread:$0]  %s1, 128, %s40, [#allocation6]
    $region9: #{tpu_custom_call.1} parent=1 // pred_fallthru
      _
    // Predicated region
    $region10: #{tpu_custom_call.1} parent=1 // pred_check
      _
    $region11: #{tpu_custom_call.1} parent=1 // pred_check_branch
      %44 = sbr.rel (0) target = $region13
    $region12: #{tpu_custom_call.1} parent=1 // pred_region
      %s46 = ssub.s32 64, 64
      %47 = vsyncadd [#allocation6], %s46
      %s49 = sshll.u32 [#allocation7], 4
      %s50 = int_to_ptr.vmem [resolvable:$true] %s49
      %52 = dma.hbm_to_vmem [thread:$0]  %s2, 64, %s50, [#allocation6]
    $region13: #{tpu_custom_call.1} parent=1 // pred_fallthru
      _
    // Predicated region
    $region14: #{tpu_custom_call.1} parent=1 // pred_check
      _
    $region15: #{tpu_custom_call.1} parent=1 // pred_check_branch
      %54 = sbr.rel (0) target = $region17
    $region16: #{tpu_custom_call.1} parent=1 // pred_region
      %s56 = ssub.s32 128, 128
      %57 = vsyncadd [#allocation9], %s56
      %s59 = sshll.u32 [#allocation8], 4
      %s60 = int_to_ptr.vmem [resolvable:$true] %s59
      %62 = dma.hbm_to_vmem [thread:$0]  %s3, 128, %s60, [#allocation9]
    $region17: #{tpu_custom_call.1} parent=1 // pred_fallthru
      _
    // Predicated region
    $region18: #{tpu_custom_call.1} parent=1 // pred_check
      _
    $region19: #{tpu_custom_call.1} parent=1 // pred_check_branch
      %64 = sbr.rel (0) target = $region21
    $region20: #{tpu_custom_call.1} parent=1 // pred_region
      %s66 = ssub.s32 512, 512
      %67 = vsyncadd [#allocation9], %s66
      %s68 = sshll.u32 [#allocation10], 4
      %s69 = int_to_ptr.vmem [resolvable:$true] %s68
      %74 = dma.hbm_to_vmem [thread:$0]  %s4, 512, %s69, [#allocation9], 128, 128, 8
    $region21: #{tpu_custom_call.1} parent=1 // pred_fallthru
      _
    // Predicated region
    $region22: #{tpu_custom_call.1} parent=1 // pred_check
      _
    $region23: #{tpu_custom_call.1} parent=1 // pred_check_branch
      %76 = sbr.rel (0) target = $region25
    $region24: #{tpu_custom_call.1} parent=1 // pred_region
      %s78 = ssub.s32 512, 512
      %79 = vsyncadd [#allocation12], %s78
      %s80 = sshll.u32 [#allocation11], 4
      %s81 = int_to_ptr.vmem [resolvable:$true] %s80
      %86 = dma.hbm_to_vmem [thread:$0]  %s5, 512, %s81, [#allocation12], 128, 128, 8
    $region25: #{tpu_custom_call.1} parent=1 // pred_fallthru
      _
    // Predicated region
    $region26: #{tpu_custom_call.1} parent=1 // pred_check
      _
    $region27: #{tpu_custom_call.1} parent=1 // pred_check_branch
      %88 = sbr.rel (0) target = $region29
    $region28: #{tpu_custom_call.1} parent=1 // pred_region
      %s90 = ssub.s32 256, 256
      %91 = vsyncadd [#allocation12], %s90
      %s92 = sshll.u32 [#allocation13], 4
      %s93 = int_to_ptr.vmem [resolvable:$true] %s92
      %98 = dma.hbm_to_vmem [thread:$0]  %s6, 256, %s93, [#allocation12], 128, 128, 8
    $region29: #{tpu_custom_call.1} parent=1 // pred_fallthru
      _
    // Predicated region
    $region30: #{tpu_custom_call.1} parent=1 // pred_check
      _
    $region31: #{tpu_custom_call.1} parent=1 // pred_check_branch
      %100 = sbr.rel (0) target = $region33
    $region32: #{tpu_custom_call.1} parent=1 // pred_region
      %s102 = ssub.s32 256, 256
      %103 = vsyncadd [#allocation15], %s102
      %s104 = sshll.u32 [#allocation14], 4
      %s105 = int_to_ptr.vmem [resolvable:$true] %s104
      %110 = dma.hbm_to_vmem [thread:$0]  %s7, 256, %s105, [#allocation15], 128, 128, 8
    $region33: #{tpu_custom_call.1} parent=1 // pred_fallthru
      _
    // Predicated region
    $region34: #{tpu_custom_call.1} parent=1 // pred_check
      _
    $region35: #{tpu_custom_call.1} parent=1 // pred_check_branch
      %112 = sbr.rel (0) target = $region37
    $region36: #{tpu_custom_call.1} parent=1 // pred_region
      %s114 = ssub.s32 128, 128
      %115 = vsyncadd [#allocation15], %s114
      %s117 = sshll.u32 [#allocation16], 4
      %s118 = int_to_ptr.vmem [resolvable:$true] %s117
      %120 = dma.hbm_to_vmem [thread:$0]  %s8, 128, %s118, [#allocation15]
    $region37: #{tpu_custom_call.1} parent=1 // pred_fallthru
      _
    // Predicated region
    $region38: #{tpu_custom_call.1} parent=1 // pred_check
      _
    $region39: #{tpu_custom_call.1} parent=1 // pred_check_branch
      %122 = sbr.rel (0) target = $region41
    $region40: #{tpu_custom_call.1} parent=1 // pred_region
      %s124 = ssub.s32 128, 128
      %125 = vsyncadd [#allocation18], %s124
      %s127 = sshll.u32 [#allocation17], 4
      %s128 = int_to_ptr.vmem [resolvable:$true] %s127
      %130 = dma.hbm_to_vmem [thread:$0]  %s9, 128, %s128, [#allocation18]
    $region41: #{tpu_custom_call.1} parent=1 // pred_fallthru
      _
    // Predicated region
    $region42: #{tpu_custom_call.1} parent=1 // pred_check
      _
    $region43: #{tpu_custom_call.1} parent=1 // pred_check_branch
      %132 = sbr.rel (0) target = $region45
    $region44: #{tpu_custom_call.1} parent=1 // pred_region
      _
    $region45: #{tpu_custom_call.1} parent=1 // pred_fallthru
      _
    // Predicated region
    $region46: #{tpu_custom_call.1} parent=1 // pred_check
      _
    $region47: #{tpu_custom_call.1} parent=1 // pred_check_branch
      %134 = sbr.rel (0) target = $region49
    $region48: #{tpu_custom_call.1} parent=1 // pred_region
      %135 = dma.done [#allocation3], 128
    $region49: #{tpu_custom_call.1} parent=1 // pred_fallthru
      _
    // Predicated region
    $region50: #{tpu_custom_call.1} parent=1 // pred_check
      _
    $region51: #{tpu_custom_call.1} parent=1 // pred_check_branch
      %137 = sbr.rel (0) target = $region53
    $region52: #{tpu_custom_call.1} parent=1 // pred_region
      %138 = dma.done [#allocation6], 128
    $region53: #{tpu_custom_call.1} parent=1 // pred_fallthru
      _
    // Predicated region
    $region54: #{tpu_custom_call.1} parent=1 // pred_check
      _
    $region55: #{tpu_custom_call.1} parent=1 // pred_check_branch
      %140 = sbr.rel (0) target = $region57
    $region56: #{tpu_custom_call.1} parent=1 // pred_region
      %141 = dma.done [#allocation6], 64
    $region57: #{tpu_custom_call.1} parent=1 // pred_fallthru
      _
    // Predicated region
    $region58: #{tpu_custom_call.1} parent=1 // pred_check
      _
    $region59: #{tpu_custom_call.1} parent=1 // pred_check_branch
      %143 = sbr.rel (0) target = $region61
    $region60: #{tpu_custom_call.1} parent=1 // pred_region
      %144 = dma.done [#allocation9], 128
    $region61: #{tpu_custom_call.1} parent=1 // pred_fallthru
      _
    // Predicated region
    $region62: #{tpu_custom_call.1} parent=1 // pred_check
      _
    $region63: #{tpu_custom_call.1} parent=1 // pred_check_branch
      %146 = sbr.rel (0) target = $region65
    $region64: #{tpu_custom_call.1} parent=1 // pred_region
      %147 = dma.done [#allocation9], 512
    $region65: #{tpu_custom_call.1} parent=1 // pred_fallthru
      _
    // Predicated region
    $region66: #{tpu_custom_call.1} parent=1 // pred_check
      _
    $region67: #{tpu_custom_call.1} parent=1 // pred_check_branch
      %149 = sbr.rel (0) target = $region69
    $region68: #{tpu_custom_call.1} parent=1 // pred_region
      %150 = dma.done [#allocation12], 512
    $region69: #{tpu_custom_call.1} parent=1 // pred_fallthru
      _
    // Predicated region
    $region70: #{tpu_custom_call.1} parent=1 // pred_check
      _
    $region71: #{tpu_custom_call.1} parent=1 // pred_check_branch
      %152 = sbr.rel (0) target = $region73
    $region72: #{tpu_custom_call.1} parent=1 // pred_region
      %153 = dma.done [#allocation12], 256
    $region73: #{tpu_custom_call.1} parent=1 // pred_fallthru
      _
    // Predicated region
    $region74: #{tpu_custom_call.1} parent=1 // pred_check
      _
    $region75: #{tpu_custom_call.1} parent=1 // pred_check_branch
      %155 = sbr.rel (0) target = $region77
    $region76: #{tpu_custom_call.1} parent=1 // pred_region
      %156 = dma.done [#allocation15], 256
    $region77: #{tpu_custom_call.1} parent=1 // pred_fallthru
      _
    // Predicated region
    $region78: #{tpu_custom_call.1} parent=1 // pred_check
      _
    $region79: #{tpu_custom_call.1} parent=1 // pred_check_branch
      %158 = sbr.rel (0) target = $region81
    $region80: #{tpu_custom_call.1} parent=1 // pred_region
      %159 = dma.done [#allocation15], 128
    $region81: #{tpu_custom_call.1} parent=1 // pred_fallthru
      _
    // Predicated region
    $region82: #{tpu_custom_call.1} parent=1 // pred_check
      _
    $region83: #{tpu_custom_call.1} parent=1 // pred_check_branch
      %161 = sbr.rel (0) target = $region85
    $region84: #{tpu_custom_call.1} parent=1 // pred_region
      %162 = dma.done [#allocation18], 128
    $region85: #{tpu_custom_call.1} parent=1 // pred_fallthru
      _
    %v163 = vld [vmem:[#allocation2] sm:$0xff]
    %v164 = vld [vmem:[#allocation7] sm:$0x1]
    %v165 = vlaneseq
    %v166 = vshrl.u32 %v165, 7
    %v167 = vsub.s32 0, %v166
    %v168 = vrot.slane %v164, %v167
    %v169 = vmul.f32 %v163, %v168
    %v170 = vld [vmem:[#allocation7 + $0x1] sm:$0x1]
    %v171 = vlaneseq
    %v172 = vshrl.u32 %v171, 7
    %v173 = vsub.s32 0, %v172
    %v174 = vrot.slane %v170, %v173
    %v175 = vadd.f32 %v169, %v174
    %v176 = vld [vmem:[#allocation5] sm:$0xff]
    %v177 = vld [vmem:[#allocation7 + $0x2] sm:$0x1]
    %v178 = vlaneseq
    %v179 = vshrl.u32 %v178, 7
    %v180 = vsub.s32 0, %v179
    %v181 = vrot.slane %v177, %v180
    %v182 = vmul.f32 %v176, %v181
    %v183 = vld [vmem:[#allocation7 + $0x3] sm:$0x1]
    %v184 = vlaneseq
    %v185 = vshrl.u32 %v184, 7
    %v186 = vsub.s32 0, %v185
    %v187 = vrot.slane %v183, %v186
    %v188 = vadd.f32 %v182, %v187
    %v189 = vld [vmem:[#allocation10] sm:$0xff]
    %v190 = vld [vmem:[#allocation10 + $0x8] sm:$0xff]
    %v191 = vld [vmem:[#allocation10 + $0x10] sm:$0xff]
    %v192 = vld [vmem:[#allocation10 + $0x18] sm:$0xff]
    %v193 = vld [vmem:[#allocation8] sm:$0x1]
    %v194 = vlaneseq
    %v195 = vshrl.u32 %v194, 7
    %v196 = vsub.s32 0, %v195
    %v197 = vrot.slane %v193, %v196
    %vm198 = vcmask 261120
    %v200 = vsel %vm198, %v175, 0
    %v203 = vsel %vm198, %v188, 0
    %205 = vmatprep.subr.mxu0 0.0
    %206 = vmatpush1.msra.mxu0 0.0
    %207 = vmatprep.subr.mxu0 0.0
    %208 = vmatpush1.msra.mxu0 0.0
    %209 = vmatprep.subr.mxu0 0.0
    %210 = vmatpush1.msra.mxu0 0.0
    %211 = vmatprep.subr.mxu0 0.0
    %212 = vmatpush1.msra.mxu0 0.0
    %213 = vmatprep.subr.mxu0 0.0
    %214 = vmatpush1.msra.mxu0 0.0
    %215 = vmatprep.subr.mxu0 0.0
    %216 = vmatpush1.msra.mxu0 0.0
    %217 = vmatprep.subr.mxu0 0.0
    %218 = vmatpush1.msra.mxu0 0.0
    %219 = vmatprep.subr.mxu0 0.0
    %220 = vmatpush1.msra.mxu0 0.0
    %221 = vmatprep.subr.mxu0 0.0
    %222 = vmatpush1.msra.mxu0 0.0
    %223 = vmatprep.subr.mxu0 0.0
    %224 = vmatpush1.msra.mxu0 0.0
    %225 = vmatprep.subr.mxu0 0.0
    %226 = vmatpush1.msra.mxu0 0.0
    %227 = vmatprep.subr.mxu0 0.0
    %228 = vmatpush1.msra.mxu0 0.0
    %229 = vmatprep.subr.mxu0 0.0
    %230 = vmatpush1.msra.mxu0 %v192
    %231 = vmatprep.subr.mxu0 0.0
    %232 = vmatpush1.msra.mxu0 %v191
    %233 = vmatprep.subr.mxu0 0.0
    %234 = vmatpush1.msra.mxu0 %v190
    %235 = vmatprep.subr.mxu0 0.0
    %236 = vmatpush1.msra.mxu0 %v189
    %237 = vmatprep.subr.mxu0 0.0
    %238 = vmatpush2.msra.mxu0 0.0
    %239 = vmatprep.subr.mxu0 0.0
    %240 = vmatpush2.msra.mxu0 0.0
    %241 = vmatprep.subr.mxu0 0.0
    %242 = vmatpush2.msra.mxu0 0.0
    %243 = vmatprep.subr.mxu0 0.0
    %244 = vmatpush2.msra.mxu0 0.0
    %245 = vmatprep.subr.mxu0 0.0
    %246 = vmatpush2.msra.mxu0 0.0
    %247 = vmatprep.subr.mxu0 0.0
    %248 = vmatpush2.msra.mxu0 0.0
    %249 = vmatprep.subr.mxu0 0.0
    %250 = vmatpush2.msra.mxu0 0.0
    %251 = vmatprep.subr.mxu0 0.0
    %252 = vmatpush2.msra.mxu0 0.0
    %253 = vmatprep.subr.mxu0 0.0
    %254 = vmatpush2.msra.mxu0 0.0
    %255 = vmatprep.subr.mxu0 0.0
    %256 = vmatpush2.msra.mxu0 0.0
    %257 = vmatprep.subr.mxu0 0.0
    %258 = vmatpush2.msra.mxu0 0.0
    %259 = vmatprep.subr.mxu0 0.0
    %260 = vmatpush2.msra.mxu0 0.0
    %261 = vmatprep.subr.mxu0 0.0
    %262 = vmatpush2.msra.mxu0 0.0
    %263 = vmatprep.subr.mxu0 0.0
    %264 = vmatpush2.msra.mxu0 0.0
    %265 = vmatprep.subr.mxu0 0.0
    %266 = vmatpush2.msra.mxu0 0.0
    %267 = vmatprep.subr.mxu0 0.0
    %268 = vmatpush2.msra.mxu0 0.0
    %269 = vmatprep.mubr.f32.mxu0 0.0
    %270 = vmatmul.mubr.f32.gmra.mxu0 %v200
    %v271 = vpop.f32.mrf.mxu0
    %v272 = vadd.f32 %v197, %v271
    %v273 = vpop.f32.mrf.mxu0
    %274 = vmatprep.mubr.f32.mxu0 0.0
    %275 = vmatmul.mubr.f32.gmra.mxu0 %v203
    %v276 = vpop.f32.mrf.mxu0
    %v277 = vadd.f32 %v197, %v276
    %v278 = vpop.f32.mrf.mxu0
    %279 = vdwg.mxu0
    %v280 = vmax.f32 %v272, 0.0
    %v281 = vmax.f32 %v277, 0.0
    %282 = vrot.lane.b32.xlu0 %v175, 24
    %v283 = vpop.permute.xlu0 %282
    %284 = vrot.lane.b32.xlu0 %v188, 24
    %v285 = vpop.permute.xlu0 %284
    %v288 = vadd.f32 %v277, %v283
    %v289 = vadd.f32 %v272, %v285
    %v290 = vadd.f32 %v288, %v289
    %v291 = vmul.f32 %v290, 0.5
    %v292 = vld [vmem:[#allocation11] sm:$0xff]
    %v293 = vld [vmem:[#allocation11 + $0x8] sm:$0xff]
    %v294 = vld [vmem:[#allocation11 + $0x10] sm:$0xff]
    %v295 = vld [vmem:[#allocation11 + $0x18] sm:$0xff]
    %v296 = vld [vmem:[#allocation8 + $0x1] sm:$0x1]
    %v297 = vlaneseq
    %v298 = vshrl.u32 %v297, 7
    %v299 = vsub.s32 0, %v298
    %v300 = vrot.slane %v296, %v299
    %303 = vrot.lane.b32.xlu0 %v288, 104
    %v304 = vpop.permute.xlu0 %303
    %305 = vrot.lane.b32.xlu0 %v289, 104
    %v306 = vpop.permute.xlu0 %305
    %v307 = vsel %vm198, %v304, 0
    %v309 = vsel %vm198, %v306, 0
    %311 = vmatprep.subr.mxu0 0.0
    %312 = vmatpush1.msra.mxu0 0.0
    %313 = vmatprep.subr.mxu0 0.0
    %314 = vmatpush1.msra.mxu0 0.0
    %315 = vmatprep.subr.mxu0 0.0
    %316 = vmatpush1.msra.mxu0 0.0
    %317 = vmatprep.subr.mxu0 0.0
    %318 = vmatpush1.msra.mxu0 0.0
    %319 = vmatprep.subr.mxu0 0.0
    %320 = vmatpush1.msra.mxu0 0.0
    %321 = vmatprep.subr.mxu0 0.0
    %322 = vmatpush1.msra.mxu0 0.0
    %323 = vmatprep.subr.mxu0 0.0
    %324 = vmatpush1.msra.mxu0 0.0
    %325 = vmatprep.subr.mxu0 0.0
    %326 = vmatpush1.msra.mxu0 0.0
    %327 = vmatprep.subr.mxu0 0.0
    %328 = vmatpush1.msra.mxu0 0.0
    %329 = vmatprep.subr.mxu0 0.0
    %330 = vmatpush1.msra.mxu0 0.0
    %331 = vmatprep.subr.mxu0 0.0
    %332 = vmatpush1.msra.mxu0 0.0
    %333 = vmatprep.subr.mxu0 0.0
    %334 = vmatpush1.msra.mxu0 0.0
    %335 = vmatprep.subr.mxu0 0.0
    %336 = vmatpush1.msra.mxu0 %v295
    %337 = vmatprep.subr.mxu0 0.0
    %338 = vmatpush1.msra.mxu0 %v294
    %339 = vmatprep.subr.mxu0 0.0
    %340 = vmatpush1.msra.mxu0 %v293
    %341 = vmatprep.subr.mxu0 0.0
    %342 = vmatpush1.msra.mxu0 %v292
    %343 = vmatprep.subr.mxu0 0.0
    %344 = vmatpush2.msra.mxu0 0.0
    %345 = vmatprep.subr.mxu0 0.0
    %346 = vmatpush2.msra.mxu0 0.0
    %347 = vmatprep.subr.mxu0 0.0
    %348 = vmatpush2.msra.mxu0 0.0
    %349 = vmatprep.subr.mxu0 0.0
    %350 = vmatpush2.msra.mxu0 0.0
    %351 = vmatprep.subr.mxu0 0.0
    %352 = vmatpush2.msra.mxu0 0.0
    %353 = vmatprep.subr.mxu0 0.0
    %354 = vmatpush2.msra.mxu0 0.0
    %355 = vmatprep.subr.mxu0 0.0
    %356 = vmatpush2.msra.mxu0 0.0
    %357 = vmatprep.subr.mxu0 0.0
    %358 = vmatpush2.msra.mxu0 0.0
    %359 = vmatprep.subr.mxu0 0.0
    %360 = vmatpush2.msra.mxu0 0.0
    %361 = vmatprep.subr.mxu0 0.0
    %362 = vmatpush2.msra.mxu0 0.0
    %363 = vmatprep.subr.mxu0 0.0
    %364 = vmatpush2.msra.mxu0 0.0
    %365 = vmatprep.subr.mxu0 0.0
    %366 = vmatpush2.msra.mxu0 0.0
    %367 = vmatprep.subr.mxu0 0.0
    %368 = vmatpush2.msra.mxu0 0.0
    %369 = vmatprep.subr.mxu0 0.0
    %370 = vmatpush2.msra.mxu0 0.0
    %371 = vmatprep.subr.mxu0 0.0
    %372 = vmatpush2.msra.mxu0 0.0
    %373 = vmatprep.subr.mxu0 0.0
    %374 = vmatpush2.msra.mxu0 0.0
    %375 = vmatprep.mubr.f32.mxu0 0.0
    %376 = vmatmul.mubr.f32.gmra.mxu0 %v307
    %v377 = vpop.f32.mrf.mxu0
    %v378 = vadd.f32 %v300, %v377
    %v379 = vpop.f32.mrf.mxu0
    %380 = vmatprep.mubr.f32.mxu0 0.0
    %381 = vmatmul.mubr.f32.gmra.mxu0 %v309
    %v382 = vpop.f32.mrf.mxu0
    %v383 = vadd.f32 %v300, %v382
    %v384 = vpop.f32.mrf.mxu0
    %385 = vdwg.mxu0
    %387 = vrot.lane.b32.xlu0 %v383, 112
    %v388 = vpop.permute.xlu0 %387
    %v390 = vadd.f32 %v280, %v378
    %v391 = vadd.f32 %v281, %v388
    %v392 = vld [vmem:[#allocation13] sm:$0xff]
    %v393 = vld [vmem:[#allocation13 + $0x8] sm:$0xff]
    %v394 = vld [vmem:[#allocation8 + $0x2] sm:$0x1]
    %v395 = vlaneseq
    %v396 = vshrl.u32 %v395, 7
    %v397 = vsub.s32 0, %v396
    %v398 = vrot.slane %v394, %v397
    %vm399 = vcmask 130048
    %v401 = vsel %vm399, %v390, 0
    %v404 = vsel %vm399, %v391, 0
    %406 = vmatprep.subr.mxu0 0.0
    %407 = vmatpush1.msra.mxu0 0.0
    %408 = vmatprep.subr.mxu0 0.0
    %409 = vmatpush1.msra.mxu0 0.0
    %410 = vmatprep.subr.mxu0 0.0
    %411 = vmatpush1.msra.mxu0 0.0
    %412 = vmatprep.subr.mxu0 0.0
    %413 = vmatpush1.msra.mxu0 0.0
    %414 = vmatprep.subr.mxu0 0.0
    %415 = vmatpush1.msra.mxu0 0.0
    %416 = vmatprep.subr.mxu0 0.0
    %417 = vmatpush1.msra.mxu0 0.0
    %418 = vmatprep.subr.mxu0 0.0
    %419 = vmatpush1.msra.mxu0 0.0
    %420 = vmatprep.subr.mxu0 0.0
    %421 = vmatpush1.msra.mxu0 0.0
    %422 = vmatprep.subr.mxu0 0.0
    %423 = vmatpush1.msra.mxu0 0.0
    %424 = vmatprep.subr.mxu0 0.0
    %425 = vmatpush1.msra.mxu0 0.0
    %426 = vmatprep.subr.mxu0 0.0
    %427 = vmatpush1.msra.mxu0 0.0
    %428 = vmatprep.subr.mxu0 0.0
    %429 = vmatpush1.msra.mxu0 0.0
    %430 = vmatprep.subr.mxu0 0.0
    %431 = vmatpush1.msra.mxu0 0.0
    %432 = vmatprep.subr.mxu0 0.0
    %433 = vmatpush1.msra.mxu0 0.0
    %434 = vmatprep.subr.mxu0 0.0
    %435 = vmatpush1.msra.mxu0 %v393
    %436 = vmatprep.subr.mxu0 0.0
    %437 = vmatpush1.msra.mxu0 %v392
    %438 = vmatprep.subr.mxu0 0.0
    %439 = vmatpush2.msra.mxu0 0.0
    %440 = vmatprep.subr.mxu0 0.0
    %441 = vmatpush2.msra.mxu0 0.0
    %442 = vmatprep.subr.mxu0 0.0
    %443 = vmatpush2.msra.mxu0 0.0
    %444 = vmatprep.subr.mxu0 0.0
    %445 = vmatpush2.msra.mxu0 0.0
    %446 = vmatprep.subr.mxu0 0.0
    %447 = vmatpush2.msra.mxu0 0.0
    %448 = vmatprep.subr.mxu0 0.0
    %449 = vmatpush2.msra.mxu0 0.0
    %450 = vmatprep.subr.mxu0 0.0
    %451 = vmatpush2.msra.mxu0 0.0
    %452 = vmatprep.subr.mxu0 0.0
    %453 = vmatpush2.msra.mxu0 0.0
    %454 = vmatprep.subr.mxu0 0.0
    %455 = vmatpush2.msra.mxu0 0.0
    %456 = vmatprep.subr.mxu0 0.0
    %457 = vmatpush2.msra.mxu0 0.0
    %458 = vmatprep.subr.mxu0 0.0
    %459 = vmatpush2.msra.mxu0 0.0
    %460 = vmatprep.subr.mxu0 0.0
    %461 = vmatpush2.msra.mxu0 0.0
    %462 = vmatprep.subr.mxu0 0.0
    %463 = vmatpush2.msra.mxu0 0.0
    %464 = vmatprep.subr.mxu0 0.0
    %465 = vmatpush2.msra.mxu0 0.0
    %466 = vmatprep.subr.mxu0 0.0
    %467 = vmatpush2.msra.mxu0 0.0
    %468 = vmatprep.subr.mxu0 0.0
    %469 = vmatpush2.msra.mxu0 0.0
    %470 = vmatprep.mubr.f32.mxu0 0.0
    %471 = vmatmul.mubr.f32.gmra.mxu0 %v401
    %v472 = vpop.f32.mrf.mxu0
    %v473 = vadd.f32 %v398, %v472
    %v474 = vpop.f32.mrf.mxu0
    %475 = vmatprep.mubr.f32.mxu0 0.0
    %476 = vmatmul.mubr.f32.gmra.mxu0 %v404
    %v477 = vpop.f32.mrf.mxu0
    %v478 = vadd.f32 %v398, %v477
    %v479 = vpop.f32.mrf.mxu0
    %480 = vdwg.mxu0
    %v481 = vadd.f32 %v478, %v390
    %v482 = vadd.f32 %v473, %v391
    %v483 = vadd.f32 %v481, %v482
    %v484 = vmul.f32 %v483, 0.5
    %v485 = vld [vmem:[#allocation14] sm:$0xff]
    %v486 = vld [vmem:[#allocation14 + $0x8] sm:$0xff]
    %v487 = vld [vmem:[#allocation8 + $0x3] sm:$0x1]
    %v488 = vlaneseq
    %v489 = vshrl.u32 %v488, 7
    %v490 = vsub.s32 0, %v489
    %v491 = vrot.slane %v487, %v490
    %v493 = vsel %vm399, %v481, 0
    %v496 = vsel %vm399, %v482, 0
    %498 = vmatprep.subr.mxu0 0.0
    %499 = vmatpush1.msra.mxu0 0.0
    %500 = vmatprep.subr.mxu0 0.0
    %501 = vmatpush1.msra.mxu0 0.0
    %502 = vmatprep.subr.mxu0 0.0
    %503 = vmatpush1.msra.mxu0 0.0
    %504 = vmatprep.subr.mxu0 0.0
    %505 = vmatpush1.msra.mxu0 0.0
    %506 = vmatprep.subr.mxu0 0.0
    %507 = vmatpush1.msra.mxu0 0.0
    %508 = vmatprep.subr.mxu0 0.0
    %509 = vmatpush1.msra.mxu0 0.0
    %510 = vmatprep.subr.mxu0 0.0
    %511 = vmatpush1.msra.mxu0 0.0
    %512 = vmatprep.subr.mxu0 0.0
    %513 = vmatpush1.msra.mxu0 0.0
    %514 = vmatprep.subr.mxu0 0.0
    %515 = vmatpush1.msra.mxu0 0.0
    %516 = vmatprep.subr.mxu0 0.0
    %517 = vmatpush1.msra.mxu0 0.0
    %518 = vmatprep.subr.mxu0 0.0
    %519 = vmatpush1.msra.mxu0 0.0
    %520 = vmatprep.subr.mxu0 0.0
    %521 = vmatpush1.msra.mxu0 0.0
    %522 = vmatprep.subr.mxu0 0.0
    %523 = vmatpush1.msra.mxu0 0.0
    %524 = vmatprep.subr.mxu0 0.0
    %525 = vmatpush1.msra.mxu0 0.0
    %526 = vmatprep.subr.mxu0 0.0
    %527 = vmatpush1.msra.mxu0 %v486
    %528 = vmatprep.subr.mxu0 0.0
    %529 = vmatpush1.msra.mxu0 %v485
    %530 = vmatprep.subr.mxu0 0.0
    %531 = vmatpush2.msra.mxu0 0.0
    %532 = vmatprep.subr.mxu0 0.0
    %533 = vmatpush2.msra.mxu0 0.0
    %534 = vmatprep.subr.mxu0 0.0
    %535 = vmatpush2.msra.mxu0 0.0
    %536 = vmatprep.subr.mxu0 0.0
    %537 = vmatpush2.msra.mxu0 0.0
    %538 = vmatprep.subr.mxu0 0.0
    %539 = vmatpush2.msra.mxu0 0.0
    %540 = vmatprep.subr.mxu0 0.0
    %541 = vmatpush2.msra.mxu0 0.0
    %542 = vmatprep.subr.mxu0 0.0
    %543 = vmatpush2.msra.mxu0 0.0
    %544 = vmatprep.subr.mxu0 0.0
    %545 = vmatpush2.msra.mxu0 0.0
    %546 = vmatprep.subr.mxu0 0.0
    %547 = vmatpush2.msra.mxu0 0.0
    %548 = vmatprep.subr.mxu0 0.0
    %549 = vmatpush2.msra.mxu0 0.0
    %550 = vmatprep.subr.mxu0 0.0
    %551 = vmatpush2.msra.mxu0 0.0
    %552 = vmatprep.subr.mxu0 0.0
    %553 = vmatpush2.msra.mxu0 0.0
    %554 = vmatprep.subr.mxu0 0.0
    %555 = vmatpush2.msra.mxu0 0.0
    %556 = vmatprep.subr.mxu0 0.0
    %557 = vmatpush2.msra.mxu0 0.0
    %558 = vmatprep.subr.mxu0 0.0
    %559 = vmatpush2.msra.mxu0 0.0
    %560 = vmatprep.subr.mxu0 0.0
    %561 = vmatpush2.msra.mxu0 0.0
    %562 = vmatprep.mubr.f32.mxu0 0.0
    %563 = vmatmul.mubr.f32.gmra.mxu0 %v493
    %v564 = vpop.f32.mrf.mxu0
    %v565 = vadd.f32 %v491, %v564
    %v566 = vpop.f32.mrf.mxu0
    %567 = vmatprep.mubr.f32.mxu0 0.0
    %568 = vmatmul.mubr.f32.gmra.mxu0 %v496
    %v569 = vpop.f32.mrf.mxu0
    %v570 = vadd.f32 %v491, %v569
    %v571 = vpop.f32.mrf.mxu0
    %572 = vdwg.mxu0
    %574 = vrot.lane.b32.xlu0 %v570, 120
    %v575 = vpop.permute.xlu0 %574
    %577 = vrot.lane.b32.xlu0 %v565, 16
    %v578 = vpop.permute.xlu0 %577
    %579 = vrot.lane.b32.xlu0 %v575, 16
    %v580 = vpop.permute.xlu0 %579
    %v583 = vadd.f32 %v280, %v578
    %v584 = vadd.f32 %v281, %v580
    %v585 = vld [vmem:[#allocation16] sm:$0xff]
    %v586 = vld [vmem:[#allocation8 + $0x4] sm:$0x1]
    %v587 = vlaneseq
    %v588 = vshrl.u32 %v587, 7
    %v589 = vsub.s32 0, %v588
    %v590 = vrot.slane %v586, %v589
    %593 = vrot.lane.b32.xlu0 %v583, 112
    %v594 = vpop.permute.xlu0 %593
    %595 = vrot.lane.b32.xlu0 %v584, 112
    %v596 = vpop.permute.xlu0 %595
    %vm597 = vcmask 64512
    %v598 = vsel %vm597, %v594, 0
    %v600 = vsel %vm597, %v596, 0
    %602 = vmatprep.subr.mxu0 0.0
    %603 = vmatpush1.msra.mxu0 0.0
    %604 = vmatprep.subr.mxu0 0.0
    %605 = vmatpush1.msra.mxu0 0.0
    %606 = vmatprep.subr.mxu0 0.0
    %607 = vmatpush1.msra.mxu0 0.0
    %608 = vmatprep.subr.mxu0 0.0
    %609 = vmatpush1.msra.mxu0 0.0
    %610 = vmatprep.subr.mxu0 0.0
    %611 = vmatpush1.msra.mxu0 0.0
    %612 = vmatprep.subr.mxu0 0.0
    %613 = vmatpush1.msra.mxu0 0.0
    %614 = vmatprep.subr.mxu0 0.0
    %615 = vmatpush1.msra.mxu0 0.0
    %616 = vmatprep.subr.mxu0 0.0
    %617 = vmatpush1.msra.mxu0 0.0
    %618 = vmatprep.subr.mxu0 0.0
    %619 = vmatpush1.msra.mxu0 0.0
    %620 = vmatprep.subr.mxu0 0.0
    %621 = vmatpush1.msra.mxu0 0.0
    %622 = vmatprep.subr.mxu0 0.0
    %623 = vmatpush1.msra.mxu0 0.0
    %624 = vmatprep.subr.mxu0 0.0
    %625 = vmatpush1.msra.mxu0 0.0
    %626 = vmatprep.subr.mxu0 0.0
    %627 = vmatpush1.msra.mxu0 0.0
    %628 = vmatprep.subr.mxu0 0.0
    %629 = vmatpush1.msra.mxu0 0.0
    %630 = vmatprep.subr.mxu0 0.0
    %631 = vmatpush1.msra.mxu0 0.0
    %632 = vmatprep.subr.mxu0 0.0
    %633 = vmatpush1.msra.mxu0 %v585
    %634 = vmatprep.subr.mxu0 0.0
    %635 = vmatpush2.msra.mxu0 0.0
    %636 = vmatprep.subr.mxu0 0.0
    %637 = vmatpush2.msra.mxu0 0.0
    %638 = vmatprep.subr.mxu0 0.0
    %639 = vmatpush2.msra.mxu0 0.0
    %640 = vmatprep.subr.mxu0 0.0
    %641 = vmatpush2.msra.mxu0 0.0
    %642 = vmatprep.subr.mxu0 0.0
    %643 = vmatpush2.msra.mxu0 0.0
    %644 = vmatprep.subr.mxu0 0.0
    %645 = vmatpush2.msra.mxu0 0.0
    %646 = vmatprep.subr.mxu0 0.0
    %647 = vmatpush2.msra.mxu0 0.0
    %648 = vmatprep.subr.mxu0 0.0
    %649 = vmatpush2.msra.mxu0 0.0
    %650 = vmatprep.subr.mxu0 0.0
    %651 = vmatpush2.msra.mxu0 0.0
    %652 = vmatprep.subr.mxu0 0.0
    %653 = vmatpush2.msra.mxu0 0.0
    %654 = vmatprep.subr.mxu0 0.0
    %655 = vmatpush2.msra.mxu0 0.0
    %656 = vmatprep.subr.mxu0 0.0
    %657 = vmatpush2.msra.mxu0 0.0
    %658 = vmatprep.subr.mxu0 0.0
    %659 = vmatpush2.msra.mxu0 0.0
    %660 = vmatprep.subr.mxu0 0.0
    %661 = vmatpush2.msra.mxu0 0.0
    %662 = vmatprep.subr.mxu0 0.0
    %663 = vmatpush2.msra.mxu0 0.0
    %664 = vmatprep.subr.mxu0 0.0
    %665 = vmatpush2.msra.mxu0 0.0
    %666 = vmatprep.mubr.f32.mxu0 0.0
    %667 = vmatmul.mubr.f32.gmra.mxu0 %v598
    %v668 = vpop.f32.mrf.mxu0
    %v669 = vadd.f32 %v590, %v668
    %v670 = vpop.f32.mrf.mxu0
    %671 = vmatprep.mubr.f32.mxu0 0.0
    %672 = vmatmul.mubr.f32.gmra.mxu0 %v600
    %v673 = vpop.f32.mrf.mxu0
    %v674 = vadd.f32 %v590, %v673
    %v675 = vpop.f32.mrf.mxu0
    %676 = vdwg.mxu0
    %v679 = vadd.f32 %v674, %v594
    %v680 = vadd.f32 %v669, %v596
    %v681 = vadd.f32 %v679, %v680
    %v682 = vmul.f32 %v681, 0.5
    %v683 = vld [vmem:[#allocation17] sm:$0xff]
    %v685 = vsel %vm597, %v682, 0
    %687 = vmatprep.subr.mxu0 0.0
    %688 = vmatpush1.msra.mxu0 0.0
    %689 = vmatprep.subr.mxu0 0.0
    %690 = vmatpush1.msra.mxu0 0.0
    %691 = vmatprep.subr.mxu0 0.0
    %692 = vmatpush1.msra.mxu0 0.0
    %693 = vmatprep.subr.mxu0 0.0
    %694 = vmatpush1.msra.mxu0 0.0
    %695 = vmatprep.subr.mxu0 0.0
    %696 = vmatpush1.msra.mxu0 0.0
    %697 = vmatprep.subr.mxu0 0.0
    %698 = vmatpush1.msra.mxu0 0.0
    %699 = vmatprep.subr.mxu0 0.0
    %700 = vmatpush1.msra.mxu0 0.0
    %701 = vmatprep.subr.mxu0 0.0
    %702 = vmatpush1.msra.mxu0 0.0
    %703 = vmatprep.subr.mxu0 0.0
    %704 = vmatpush1.msra.mxu0 0.0
    %705 = vmatprep.subr.mxu0 0.0
    %706 = vmatpush1.msra.mxu0 0.0
    %707 = vmatprep.subr.mxu0 0.0
    %708 = vmatpush1.msra.mxu0 0.0
    %709 = vmatprep.subr.mxu0 0.0
    %710 = vmatpush1.msra.mxu0 0.0
    %711 = vmatprep.subr.mxu0 0.0
    %712 = vmatpush1.msra.mxu0 0.0
    %713 = vmatprep.subr.mxu0 0.0
    %714 = vmatpush1.msra.mxu0 0.0
    %715 = vmatprep.subr.mxu0 0.0
    %716 = vmatpush1.msra.mxu0 0.0
    %717 = vmatprep.subr.mxu0 0.0
    %718 = vmatpush1.msra.mxu0 %v683
    %719 = vmatprep.subr.mxu0 0.0
    %720 = vmatpush2.msra.mxu0 0.0
    %721 = vmatprep.subr.mxu0 0.0
    %722 = vmatpush2.msra.mxu0 0.0
    %723 = vmatprep.subr.mxu0 0.0
    %724 = vmatpush2.msra.mxu0 0.0
    %725 = vmatprep.subr.mxu0 0.0
    %726 = vmatpush2.msra.mxu0 0.0
    %727 = vmatprep.subr.mxu0 0.0
    %728 = vmatpush2.msra.mxu0 0.0
    %729 = vmatprep.subr.mxu0 0.0
    %730 = vmatpush2.msra.mxu0 0.0
    %731 = vmatprep.subr.mxu0 0.0
    %732 = vmatpush2.msra.mxu0 0.0
    %733 = vmatprep.subr.mxu0 0.0
    %734 = vmatpush2.msra.mxu0 0.0
    %735 = vmatprep.subr.mxu0 0.0
    %736 = vmatpush2.msra.mxu0 0.0
    %737 = vmatprep.subr.mxu0 0.0
    %738 = vmatpush2.msra.mxu0 0.0
    %739 = vmatprep.subr.mxu0 0.0
    %740 = vmatpush2.msra.mxu0 0.0
    %741 = vmatprep.subr.mxu0 0.0
    %742 = vmatpush2.msra.mxu0 0.0
    %743 = vmatprep.subr.mxu0 0.0
    %744 = vmatpush2.msra.mxu0 0.0
    %745 = vmatprep.subr.mxu0 0.0
    %746 = vmatpush2.msra.mxu0 0.0
    %747 = vmatprep.subr.mxu0 0.0
    %748 = vmatpush2.msra.mxu0 0.0
    %749 = vmatprep.subr.mxu0 0.0
    %750 = vmatpush2.msra.mxu0 0.0
    %751 = vmatprep.mubr.f32.mxu0 0.0
    %752 = vmatmul.mubr.f32.gmra.mxu0 %v685
    %v753 = vpop.f32.mrf.mxu0
    %v754 = vadd.f32 0.0, %v753
    %v755 = vpop.f32.mrf.mxu0
    %756 = vdwg.mxu0
    %v757 = vadd.f32 %v484, %v754
    %v758 = vld [vmem:[#allocation8 + $0x5] sm:$0x1]
    %v759 = vlaneseq
    %v760 = vshrl.u32 %v759, 7
    %v761 = vsub.s32 0, %v760
    %v762 = vrot.slane %v758, %v761
    %v763 = vadd.f32 %v757, %v762
    %v764 = vld [vmem:[%s10] sm:$0xff]
    %v765 = vld [vmem:[%s10 + $0x8] sm:$0xff]
    %v767 = vsel %vm399, %v763, 0
    %769 = vmatprep.subr.mxu0 0.0
    %770 = vmatpush1.msra.mxu0 0.0
    %771 = vmatprep.subr.mxu0 0.0
    %772 = vmatpush1.msra.mxu0 0.0
    %773 = vmatprep.subr.mxu0 0.0
    %774 = vmatpush1.msra.mxu0 0.0
    %775 = vmatprep.subr.mxu0 0.0
    %776 = vmatpush1.msra.mxu0 0.0
    %777 = vmatprep.subr.mxu0 0.0
    %778 = vmatpush1.msra.mxu0 0.0
    %779 = vmatprep.subr.mxu0 0.0
    %780 = vmatpush1.msra.mxu0 0.0
    %781 = vmatprep.subr.mxu0 0.0
    %782 = vmatpush1.msra.mxu0 0.0
    %783 = vmatprep.subr.mxu0 0.0
    %784 = vmatpush1.msra.mxu0 0.0
    %785 = vmatprep.subr.mxu0 0.0
    %786 = vmatpush1.msra.mxu0 0.0
    %787 = vmatprep.subr.mxu0 0.0
    %788 = vmatpush1.msra.mxu0 0.0
    %789 = vmatprep.subr.mxu0 0.0
    %790 = vmatpush1.msra.mxu0 0.0
    %791 = vmatprep.subr.mxu0 0.0
    %792 = vmatpush1.msra.mxu0 0.0
    %793 = vmatprep.subr.mxu0 0.0
    %794 = vmatpush1.msra.mxu0 0.0
    %795 = vmatprep.subr.mxu0 0.0
    %796 = vmatpush1.msra.mxu0 0.0
    %797 = vmatprep.subr.mxu0 0.0
    %798 = vmatpush1.msra.mxu0 %v765
    %799 = vmatprep.subr.mxu0 0.0
    %800 = vmatpush1.msra.mxu0 %v764
    %801 = vmatprep.subr.mxu0 0.0
    %802 = vmatpush2.msra.mxu0 0.0
    %803 = vmatprep.subr.mxu0 0.0
    %804 = vmatpush2.msra.mxu0 0.0
    %805 = vmatprep.subr.mxu0 0.0
    %806 = vmatpush2.msra.mxu0 0.0
    %807 = vmatprep.subr.mxu0 0.0
    %808 = vmatpush2.msra.mxu0 0.0
    %809 = vmatprep.subr.mxu0 0.0
    %810 = vmatpush2.msra.mxu0 0.0
    %811 = vmatprep.subr.mxu0 0.0
    %812 = vmatpush2.msra.mxu0 0.0
    %813 = vmatprep.subr.mxu0 0.0
    %814 = vmatpush2.msra.mxu0 0.0
    %815 = vmatprep.subr.mxu0 0.0
    %816 = vmatpush2.msra.mxu0 0.0
    %817 = vmatprep.subr.mxu0 0.0
    %818 = vmatpush2.msra.mxu0 0.0
    %819 = vmatprep.subr.mxu0 0.0
    %820 = vmatpush2.msra.mxu0 0.0
    %821 = vmatprep.subr.mxu0 0.0
    %822 = vmatpush2.msra.mxu0 0.0
    %823 = vmatprep.subr.mxu0 0.0
    %824 = vmatpush2.msra.mxu0 0.0
    %825 = vmatprep.subr.mxu0 0.0
    %826 = vmatpush2.msra.mxu0 0.0
    %827 = vmatprep.subr.mxu0 0.0
    %828 = vmatpush2.msra.mxu0 0.0
    %829 = vmatprep.subr.mxu0 0.0
    %830 = vmatpush2.msra.mxu0 0.0
    %831 = vmatprep.subr.mxu0 0.0
    %832 = vmatpush2.msra.mxu0 0.0
    %833 = vmatprep.mubr.f32.mxu0 0.0
    %834 = vmatmul.mubr.f32.gmra.mxu0 %v767
    %v835 = vpop.f32.mrf.mxu0
    %v836 = vadd.f32 0.0, %v835
    %v837 = vpop.f32.mrf.mxu0
    %838 = vdwg.mxu0
    %840 = vrot.lane.b32.xlu0 %v836, 24
    %v841 = vpop.permute.xlu0 %840
    %v843 = vadd.f32 %v291, %v841
    %v844 = vld [vmem:[#allocation8 + $0x6] sm:$0x1]
    %v845 = vlaneseq
    %v846 = vshrl.u32 %v845, 7
    %v847 = vsub.s32 0, %v846
    %v848 = vrot.slane %v844, %v847
    %850 = vrot.lane.b32.xlu0 %v848, 24
    %v851 = vpop.permute.xlu0 %850
    %v853 = vadd.f32 %v843, %v851
    %855 = vrot.lane.b32.xlu0 %v853, 104
    %v856 = vpop.permute.xlu0 %855
    %858 = vst.msk [vmem:[#allocation19] sm:$0xff] %vm198, %v856
    // Predicated region
    $region86: #{tpu_custom_call.1} parent=1 // pred_check
      _
    $region87: #{tpu_custom_call.1} parent=1 // pred_check_branch
      %860 = sbr.rel (0) target = $region89
    $region88: #{tpu_custom_call.1} parent=1 // pred_region
      %s862 = ssub.s32 128, 128
      %863 = vsyncadd [#allocation4], %s862
      %s865 = sshll.u32 [#allocation19], 4
      %s866 = int_to_ptr.vmem [resolvable:$true] %s865
      %868 = dma.vmem_to_hbm [thread:$0]  %s866, 128, %s11, [#allocation4]
    $region89: #{tpu_custom_call.1} parent=1 // pred_fallthru
      _
    // Predicated region
    $region90: #{tpu_custom_call.1} parent=1 // pred_check
      _
    $region91: #{tpu_custom_call.1} parent=1 // pred_check_branch
      %870 = sbr.rel (0) target = $region93
    $region92: #{tpu_custom_call.1} parent=1 // pred_region
      %871 = dma.done [#allocation4], 128
    $region93: #{tpu_custom_call.1} parent=1 // pred_fallthru
      _
    %872 = vsyncpa [#allocation3], 1
    %873 = vsyncpa [#allocation6], 1
    %874 = vsyncpa [#allocation9], 1
    %875 = vsyncpa [#allocation12], 1
    %876 = vsyncpa [#allocation15], 1
    %877 = vsyncpa [#allocation18], 1
    %878 = vsyncpa [#allocation4], 1

</llo_original>
